<compile_context>
chip_gen: v6e
topology: v6e:2x2x1
jax: 0.10.0
libtpu: 0.0.40
codegen_flags: <defaults>
</compile_context>

<pallas_src>
import math

import jax
import jax.numpy as jnp
from jax.experimental import pallas as pl
from jax.experimental.pallas import tpu as pltpu


def _round_up(x, m):
    return ((x + m - 1) // m) * m


def _fourier_kernel(x_ref, w_ref, b_ref, o_ref, acc_ref):
    k = pl.program_id(2)

    @pl.when(k == 0)
    def _():
        acc_ref[...] = jnp.zeros_like(acc_ref)

    # x tile (tm, tk) contracted with weight tile (tn, tk) on dim 1 of both
    # -> (tm, tn) on the MXU, accumulated in f32. No transposed weight copy.
    acc_ref[...] += jax.lax.dot_general(
        x_ref[...],
        w_ref[...],
        dimension_numbers=(((1,), (1,)), ((), ())),
        preferred_element_type=jnp.float32,
    )

    @pl.when(k == pl.num_programs(2) - 1)
    def _():
        # Epilogue only once, on the completed accumulator: bias (1, tn)
        # broadcasts over rows, sine runs on the EUP, then cast + store.
        o_ref[...] = jnp.sin(acc_ref[...] + b_ref[...]).astype(o_ref.dtype)


def fourier_layer(x, weight, bias, *, tm_max=256, tn_max=512, tk_max=512):
    """y = sin(x @ weight.T + bias), matching torch.sin(nn.Linear(...)(x)).

    x: (M, K) f32, weight: (N, K) f32 (PyTorch layout), bias: (N,) f32.
    """
    M, K = x.shape
    N, Kw = weight.shape
    assert K == Kw, f"in_dim mismatch: {K} vs {Kw}"
    assert bias.shape == (N,), f"bias shape {bias.shape} != ({N},)"

    out_dtype = x.dtype

    # Tile sizes: clamp the caps to the (minimally padded) problem so tiny
    # problems stay single-block; then pad every dim to a tile multiple.
    tm = min(tm_max, _round_up(M, 8))
    tn = min(tn_max, _round_up(N, 128))   # lane-dense output tiles
    tk = min(tk_max, _round_up(K, 128))
    Mp = _round_up(M, tm)
    Np = _round_up(N, tn)
    Kp = _round_up(K, tk)

    xp = x if (Mp == M and Kp == K) else jnp.pad(x, ((0, Mp - M), (0, Kp - K)))
    wp = weight if (Np == N and Kp == K) else jnp.pad(
        weight, ((0, Np - N), (0, Kp - K)))
    bp = (bias if Np == N else jnp.pad(bias, (0, Np - N))).reshape(1, Np)

    grid = (Mp // tm, Np // tn, Kp // tk)

    out = pl.pallas_call(
        _fourier_kernel,
        out_shape=jax.ShapeDtypeStruct((Mp, Np), out_dtype),
        grid_spec=pltpu.PrefetchScalarGridSpec(
            num_scalar_prefetch=0,
            grid=grid,
            in_specs=[
                pl.BlockSpec((tm, tk), lambda i, j, k: (i, k)),   # x
                pl.BlockSpec((tn, tk), lambda i, j, k: (j, k)),   # weight (N, K)
                pl.BlockSpec((1, tn), lambda i, j, k: (0, j)),    # bias
            ],
            out_specs=pl.BlockSpec((tm, tn), lambda i, j, k: (i, j)),
            scratch_shapes=[pltpu.VMEM((tm, tn), jnp.float32)],
        ),
        compiler_params=pltpu.CompilerParams(
            dimension_semantics=("parallel", "parallel", "arbitrary"),
        ),
    )(xp, wp, bp)

    if Mp != M or Np != N:
        out = out[:M, :N]
    return out


def init_fourier_layer_params(key, in_features, out_features, code_size,
                              weight_scale, layer):
    """Deterministic re-implementation of FourierLayerOriginal.__init__."""
    in_dim = in_features + code_size if layer == 0 else in_features
    k_w, k_b = jax.random.split(key)
    # nn.Linear default init: U(-1/sqrt(fan_in), 1/sqrt(fan_in)) for weight,
    # then scaled by weight_scale; bias is overwritten with U(-pi, pi).
    bound = 1.0 / math.sqrt(in_dim)
    weight = jax.random.uniform(
        k_w, (out_features, in_dim), jnp.float32, -bound, bound) * weight_scale
    bias = jax.random.uniform(
        k_b, (out_features,), jnp.float32, -math.pi, math.pi)
    return weight, bias


if __name__ == "__main__":
    key = jax.random.PRNGKey(0)

    # --- Test 1: shapes consistent with the module's forward (layer == 0). ---
    batch = 8
    in_features = 16
    code_size = 16
    out_features = 32
    weight_scale = 30.0

    k_param, k_x, k_rest = jax.random.split(key, 3)
    weight, bias = init_fourier_layer_params(
        k_param, in_features, out_features, code_size, weight_scale, layer=0)

    in_dim = in_features + code_size
    x = jax.random.normal(k_x, (batch, in_dim), jnp.float32)

    y = fourier_layer(x, weight, bias)
    jax.block_until_ready(y)

    y_ref = jnp.sin(x @ weight.T + bias)
    assert y.shape == (batch, out_features)
    assert jnp.allclose(y, y_ref, atol=1e-5, rtol=1e-5), "mismatch vs reference"

    # --- Test 2: exercises multi-step K accumulation + N/K zero-padding. ---
    ka, kb, kc = jax.random.split(k_rest, 3)
    M2, Kd2, N2 = 64, 640, 384
    x2 = jax.random.normal(ka, (M2, Kd2), jnp.float32)
    w2 = jax.random.normal(kb, (N2, Kd2), jnp.float32) / math.sqrt(Kd2)
    b2 = jax.random.uniform(kc, (N2,), jnp.float32, -math.pi, math.pi)

    y2 = fourier_layer(x2, w2, b2)
    jax.block_until_ready(y2)

    y2_ref = jnp.sin(x2 @ w2.T + b2)
    assert y2.shape == (M2, N2)
    assert jnp.allclose(y2, y2_ref, atol=1e-5, rtol=1e-5), "mismatch vs reference (tiled)"

    print("KERNEL_OK")
</pallas_src>

<mosaic_0001>
module attributes {stable_mosaic.version = 11 : i64} {
  func.func @_fourier_kernel(%arg0: i32, %arg1: i32, %arg2: i32, %arg3: memref<8x128xf32, #tpu.memory_space<vmem>>, %arg4: memref<128x128xf32, #tpu.memory_space<vmem>>, %arg5: memref<1x128xf32, #tpu.memory_space<vmem>>, %arg6: memref<8x128xf32, #tpu.memory_space<vmem>>, %arg7: memref<8x128xf32, #tpu.memory_space<vmem>>) attributes {dimension_semantics = [#tpu.dimension_semantics<parallel>, #tpu.dimension_semantics<parallel>, #tpu.dimension_semantics<arbitrary>], iteration_bounds = array<i64: 1, 1, 1>, scalar_prefetch = 0 : i64, scratch_operands = 1 : i64, tpu.core_type = #tpu.core_type<tc>, window_params = [{transform_indices = @transform_0, window_bounds = array<i64: 8, 128>}, {transform_indices = @transform_1, window_bounds = array<i64: 128, 128>}, {transform_indices = @transform_2, window_bounds = array<i64: 1, 128>}, {transform_indices = @transform_3, window_bounds = array<i64: 8, 128>}]} {
    %c0_i32 = arith.constant 0 : i32
    %0 = arith.cmpi eq, %arg2, %c0_i32 : i32
    %1 = arith.extui %0 : i1 to i32
    %c0_i32_0 = arith.constant 0 : i32
    %2 = arith.cmpi ne, %1, %c0_i32_0 : i32
    scf.if %2 {
      %cst_10 = arith.constant 0.000000e+00 : f32
      %12 = vector.broadcast %cst_10 : f32 to vector<8x128xf32>
      %c0_11 = arith.constant 0 : index
      %c0_12 = arith.constant 0 : index
      %13 = vector.load %arg7[%c0_11, %c0_12] : memref<8x128xf32, #tpu.memory_space<vmem>>, vector<8x128xf32>
      tpu.vector_store %arg7[%c0_11, %c0_12], %12 {strides = array<i32>} : memref<8x128xf32, #tpu.memory_space<vmem>>, vector<8x128xf32>,
    } else {
    }
    %c0 = arith.constant 0 : index
    %c0_1 = arith.constant 0 : index
    %3 = vector.load %arg7[%c0, %c0_1] : memref<8x128xf32, #tpu.memory_space<vmem>>, vector<8x128xf32>
    %c0_2 = arith.constant 0 : index
    %c0_3 = arith.constant 0 : index
    %4 = vector.load %arg3[%c0_2, %c0_3] : memref<8x128xf32, #tpu.memory_space<vmem>>, vector<8x128xf32>
    %c0_4 = arith.constant 0 : index
    %c0_5 = arith.constant 0 : index
    %5 = vector.load %arg4[%c0_4, %c0_5] : memref<128x128xf32, #tpu.memory_space<vmem>>, vector<128x128xf32>
    %cst = arith.constant dense<0.000000e+00> : vector<8x128xf32>
    %6 = tpu.matmul %4, %5, %cst {dimension_numbers = #tpu.dot_dimension_numbers<[1], [1], [0], [0], [0, 0, 1, 0], [], []>} : vector<8x128xf32>, vector<128x128xf32>, vector<8x128xf32> -> vector<8x128xf32>
    %7 = arith.addf %3, %6 : vector<8x128xf32>
    %c0_6 = arith.constant 0 : index
    %c0_7 = arith.constant 0 : index
    %8 = vector.load %arg7[%c0_6, %c0_7] : memref<8x128xf32, #tpu.memory_space<vmem>>, vector<8x128xf32>
    tpu.vector_store %arg7[%c0_6, %c0_7], %7 {strides = array<i32>} : memref<8x128xf32, #tpu.memory_space<vmem>>, vector<8x128xf32>,
    %c0_i32_8 = arith.constant 0 : i32
    %9 = arith.cmpi eq, %arg2, %c0_i32_8 : i32
    %10 = arith.extui %9 : i1 to i32
    %c0_i32_9 = arith.constant 0 : i32
    %11 = arith.cmpi ne, %10, %c0_i32_9 : i32
    scf.if %11 {
      %c0_10 = arith.constant 0 : index
      %c0_11 = arith.constant 0 : index
      %12 = vector.load %arg7[%c0_10, %c0_11] : memref<8x128xf32, #tpu.memory_space<vmem>>, vector<8x128xf32>
      %c0_12 = arith.constant 0 : index
      %c0_13 = arith.constant 0 : index
      %13 = vector.load %arg5[%c0_12, %c0_13] : memref<1x128xf32, #tpu.memory_space<vmem>>, vector<1x128xf32>
      %14 = vector.broadcast %13 : vector<1x128xf32> to vector<8x128xf32>
      %15 = arith.addf %12, %14 : vector<8x128xf32>
      %16 = math.sin %15 : vector<8x128xf32>
      %c0_14 = arith.constant 0 : index
      %c0_15 = arith.constant 0 : index
      %17 = vector.load %arg6[%c0_14, %c0_15] : memref<8x128xf32, #tpu.memory_space<vmem>>, vector<8x128xf32>
      tpu.vector_store %arg6[%c0_14, %c0_15], %16 {strides = array<i32>} : memref<8x128xf32, #tpu.memory_space<vmem>>, vector<8x128xf32>,
    } else {
    }
    return
  }
  func.func @transform_0(%arg0: i32, %arg1: i32, %arg2: i32) -> (i32, i32) {
    %c0_i32 = arith.constant 0 : i32
    return %arg0, %arg2 : i32, i32
  }
  func.func @transform_1(%arg0: i32, %arg1: i32, %arg2: i32) -> (i32, i32) {
    %c0_i32 = arith.constant 0 : i32
    return %arg1, %arg2 : i32, i32
  }
  func.func @transform_2(%arg0: i32, %arg1: i32, %arg2: i32) -> (i32, i32) {
    %c0_i32 = arith.constant 0 : i32
    %c0_i32_0 = arith.constant 0 : i32
    return %c0_i32, %arg1 : i32, i32
  }
  func.func @transform_3(%arg0: i32, %arg1: i32, %arg2: i32) -> (i32, i32) {
    %c0_i32 = arith.constant 0 : i32
    return %arg0, %arg1 : i32, i32
  }
}

</mosaic_0001>

<llo_original>
// kernel: tpu_custom_call.1
$region0: #{tpu_custom_call.1}
  #allocation0 [shape = 'u32[]', space=smem, size = 0x4, offset = 0x4, fixed_abs, tag = 'smem constant byte address 0x4 - core index']
  #allocation1 [shape = 'u32[144,128]{1,0:T(1,128)}', space=vmem, size = 0x12000, scoped, tag = 'internal scratch']
  #allocation2 [shape = 'f32[8,128]{1,0:T(8,128)}', space=vmem, size = 0x1000, scoped, tag = 'scratch operand']
  %s0 = inlined_call_operand.hbm [shape: f32[8,128], index: 0, kind: input, shape index: {}]
  %s1 = inlined_call_operand.hbm [shape: f32[128,128], index: 1, kind: input, shape index: {}]
  %s2 = inlined_call_operand.vmem [shape: f32[1,128], index: 2, kind: input, shape index: {}]
  %s3 = inlined_call_operand.hbm [shape: f32[8,128], index: 3, kind: output, shape index: {}]
  %s4 = sld [smem:[#allocation0]]
  $region38: #{tpu_custom_call.1} parent=0
    _
  %s6 = ssub.s32 1, %s4
  %s7 = scalar_select 0, %s6, %s4
  $region1: #{tpu_custom_call.1} parent=0
    #allocation3 [shape = 'u8[4096]{0}', space=vmem, size = 0x1000, scoped, tag = 'input window, operand 0, single buffered']
    #allocation4 [shape = 's32[1]{0}', space=sflag, size = 0x4, scoped, tag = 'scoped memory for tpu_custom_call.1']
    #allocation5 [shape = 's32[1]{0}', space=sflag, size = 0x4, scoped, tag = 'scoped memory for tpu_custom_call.1']
    #allocation6 [shape = 'u8[65536]{0}', space=vmem, size = 0x10000, scoped, tag = 'input window, operand 1, single buffered']
    #allocation7 [shape = 's32[1]{0}', space=sflag, size = 0x4, scoped, tag = 'scoped memory for tpu_custom_call.1']
    #allocation8 [shape = 'u8[4096]{0}', space=vmem, size = 0x1000, scoped, tag = 'output window, operand 0, single buffered']
    %8 = vsyncpa [#allocation4], 0
    %9 = vsyncpa [#allocation7], 0
    %10 = vsyncpa [#allocation5], 0
    // Predicated region
    $region2: #{tpu_custom_call.1} parent=1 // pred_check
      _
    $region3: #{tpu_custom_call.1} parent=1 // pred_check_branch
      %12 = sbr.rel (0) target = $region5
    $region4: #{tpu_custom_call.1} parent=1 // pred_region
      %s14 = ssub.s32 128, 128
      %15 = vsyncadd [#allocation4], %s14
      %s17 = sshll.u32 [#allocation3], 4
      %s18 = int_to_ptr.vmem [resolvable:$true] %s17
      %20 = dma.hbm_to_vmem [thread:$0]  %s0, 128, %s18, [#allocation4]
    $region5: #{tpu_custom_call.1} parent=1 // pred_fallthru
      _
    // Predicated region
    $region6: #{tpu_custom_call.1} parent=1 // pred_check
      _
    $region7: #{tpu_custom_call.1} parent=1 // pred_check_branch
      %22 = sbr.rel (0) target = $region9
    $region8: #{tpu_custom_call.1} parent=1 // pred_region
      %s24 = ssub.s32 2048, 2048
      %25 = vsyncadd [#allocation7], %s24
      %s26 = sshll.u32 [#allocation6], 4
      %s27 = int_to_ptr.vmem [resolvable:$true] %s26
      %32 = dma.hbm_to_vmem [thread:$0]  %s1, 2048, %s27, [#allocation7], 128, 128, 8
    $region9: #{tpu_custom_call.1} parent=1 // pred_fallthru
      _
    // Predicated region
    $region10: #{tpu_custom_call.1} parent=1 // pred_check
      _
    $region11: #{tpu_custom_call.1} parent=1 // pred_check_branch
      %34 = sbr.rel (0) target = $region13
    $region12: #{tpu_custom_call.1} parent=1 // pred_region
      _
    $region13: #{tpu_custom_call.1} parent=1 // pred_fallthru
      _
    // Predicated region
    $region14: #{tpu_custom_call.1} parent=1 // pred_check
      _
    $region15: #{tpu_custom_call.1} parent=1 // pred_check_branch
      %36 = sbr.rel (0) target = $region17
    $region16: #{tpu_custom_call.1} parent=1 // pred_region
      %37 = dma.done [#allocation4], 128
    $region17: #{tpu_custom_call.1} parent=1 // pred_fallthru
      _
    // Predicated region
    $region18: #{tpu_custom_call.1} parent=1 // pred_check
      _
    $region19: #{tpu_custom_call.1} parent=1 // pred_check_branch
      %39 = sbr.rel (0) target = $region21
    $region20: #{tpu_custom_call.1} parent=1 // pred_region
      %40 = dma.done [#allocation7], 2048
    $region21: #{tpu_custom_call.1} parent=1 // pred_fallthru
      _
    %p41 = scmp.eq.s32.totalorder 0, 0
    // Predicated region
    $region22: #{tpu_custom_call.1} parent=1 // pred_check
      %p42 = pneg %p41
    $region23: #{tpu_custom_call.1} parent=1 // pred_check_branch
      %44 = sbr.rel (%p42) target = $region25
    $region24: #{tpu_custom_call.1} parent=1 // pred_region
      %45 = vst [vmem:[#allocation2] sm:$0xff] 0.0
    $region25: #{tpu_custom_call.1} parent=1 // pred_fallthru
      _
    %v46 = vld [vmem:[#allocation2] sm:$0xff]
    %v47 = vld [vmem:[#allocation3] sm:$0xff]
    %v48 = vld [vmem:[#allocation6] sm:$0xff]
    %v49 = vld [vmem:[#allocation6 + $0x8] sm:$0xff]
    %v50 = vld [vmem:[#allocation6 + $0x10] sm:$0xff]
    %v51 = vld [vmem:[#allocation6 + $0x18] sm:$0xff]
    %v52 = vld [vmem:[#allocation6 + $0x20] sm:$0xff]
    %v53 = vld [vmem:[#allocation6 + $0x28] sm:$0xff]
    %v54 = vld [vmem:[#allocation6 + $0x30] sm:$0xff]
    %v55 = vld [vmem:[#allocation6 + $0x38] sm:$0xff]
    %v56 = vld [vmem:[#allocation6 + $0x40] sm:$0xff]
    %v57 = vld [vmem:[#allocation6 + $0x48] sm:$0xff]
    %v58 = vld [vmem:[#allocation6 + $0x50] sm:$0xff]
    %v59 = vld [vmem:[#allocation6 + $0x58] sm:$0xff]
    %v60 = vld [vmem:[#allocation6 + $0x60] sm:$0xff]
    %v61 = vld [vmem:[#allocation6 + $0x68] sm:$0xff]
    %v62 = vld [vmem:[#allocation6 + $0x70] sm:$0xff]
    %v63 = vld [vmem:[#allocation6 + $0x78] sm:$0xff]
    %64 = vmatprep.subr.mxu0 0.0
    %65 = vmatpush1.xpose.msra.mxu0 %v63
    %66 = vmatprep.subr.mxu0 0.0
    %67 = vmatpush1.xpose.msra.mxu0 %v62
    %68 = vmatprep.subr.mxu0 0.0
    %69 = vmatpush1.xpose.msra.mxu0 %v61
    %70 = vmatprep.subr.mxu0 0.0
    %71 = vmatpush1.xpose.msra.mxu0 %v60
    %72 = vmatprep.subr.mxu0 0.0
    %73 = vmatpush1.xpose.msra.mxu0 %v59
    %74 = vmatprep.subr.mxu0 0.0
    %75 = vmatpush1.xpose.msra.mxu0 %v58
    %76 = vmatprep.subr.mxu0 0.0
    %77 = vmatpush1.xpose.msra.mxu0 %v57
    %78 = vmatprep.subr.mxu0 0.0
    %79 = vmatpush1.xpose.msra.mxu0 %v56
    %80 = vmatprep.subr.mxu0 0.0
    %81 = vmatpush1.xpose.msra.mxu0 %v55
    %82 = vmatprep.subr.mxu0 0.0
    %83 = vmatpush1.xpose.msra.mxu0 %v54
    %84 = vmatprep.subr.mxu0 0.0
    %85 = vmatpush1.xpose.msra.mxu0 %v53
    %86 = vmatprep.subr.mxu0 0.0
    %87 = vmatpush1.xpose.msra.mxu0 %v52
    %88 = vmatprep.subr.mxu0 0.0
    %89 = vmatpush1.xpose.msra.mxu0 %v51
    %90 = vmatprep.subr.mxu0 0.0
    %91 = vmatpush1.xpose.msra.mxu0 %v50
    %92 = vmatprep.subr.mxu0 0.0
    %93 = vmatpush1.xpose.msra.mxu0 %v49
    %94 = vmatprep.subr.mxu0 0.0
    %95 = vmatpush1.xpose.msra.mxu0 %v48
    %96 = vmatprep.subr.mxu0 0.0
    %97 = vmatpush2.xpose.msra.mxu0 0.0
    %98 = vmatprep.subr.mxu0 0.0
    %99 = vmatpush2.xpose.msra.mxu0 0.0
    %100 = vmatprep.subr.mxu0 0.0
    %101 = vmatpush2.xpose.msra.mxu0 0.0
    %102 = vmatprep.subr.mxu0 0.0
    %103 = vmatpush2.xpose.msra.mxu0 0.0
    %104 = vmatprep.subr.mxu0 0.0
    %105 = vmatpush2.xpose.msra.mxu0 0.0
    %106 = vmatprep.subr.mxu0 0.0
    %107 = vmatpush2.xpose.msra.mxu0 0.0
    %108 = vmatprep.subr.mxu0 0.0
    %109 = vmatpush2.xpose.msra.mxu0 0.0
    %110 = vmatprep.subr.mxu0 0.0
    %111 = vmatpush2.xpose.msra.mxu0 0.0
    %112 = vmatprep.subr.mxu0 0.0
    %113 = vmatpush2.xpose.msra.mxu0 0.0
    %114 = vmatprep.subr.mxu0 0.0
    %115 = vmatpush2.xpose.msra.mxu0 0.0
    %116 = vmatprep.subr.mxu0 0.0
    %117 = vmatpush2.xpose.msra.mxu0 0.0
    %118 = vmatprep.subr.mxu0 0.0
    %119 = vmatpush2.xpose.msra.mxu0 0.0
    %120 = vmatprep.subr.mxu0 0.0
    %121 = vmatpush2.xpose.msra.mxu0 0.0
    %122 = vmatprep.subr.mxu0 0.0
    %123 = vmatpush2.xpose.msra.mxu0 0.0
    %124 = vmatprep.subr.mxu0 0.0
    %125 = vmatpush2.xpose.msra.mxu0 0.0
    %126 = vmatprep.subr.mxu0 0.0
    %127 = vmatpush2.xpose.msra.mxu0 0.0
    %128 = vmatprep.mubr.f32.mxu0 0.0
    %129 = vmatmul.mubr.f32.gmra.mxu0 %v47
    %v130 = vpop.f32.mrf.mxu0
    %v131 = vadd.f32 0.0, %v130
    %v132 = vpop.f32.mrf.mxu0
    %133 = vdwg.mxu0
    %v134 = vadd.f32 %v46, %v131
    %135 = vst [vmem:[#allocation2] sm:$0xff] %v134
    // Predicated region
    $region26: #{tpu_custom_call.1} parent=1 // pred_check
      %p136 = pneg %p41
    $region27: #{tpu_custom_call.1} parent=1 // pred_check_branch
      %138 = sbr.rel (%p136) target = $region29
    $region28: #{tpu_custom_call.1} parent=1 // pred_region
      %v139 = vld [vmem:[#allocation2] sm:$0xff]
      %v140 = vld [vmem:[%s2] sm:$0x1]
      %v142 = vlaneseq
      %v143 = vshrl.u32 %v142, 7
      %v144 = vsub.s32 0, %v143
      %v145 = vrot.slane %v140, %v144
      %v147 = vadd.f32 %v139, %v145
      %v148 = vand.u32 2147483647, %v147
      %vm149 = vcmp.le.f32.partialorder %v148, 0.7853982
      %vm150 = vcmp.lt.s32.totalorder %v147, 0
      %v151 = vand.u32 %v147, 2139095040
      %v152 = vshrl.u32 %v151, 23
      %v153 = vsub.s32 %v152, 127
      %v154 = vand.u32 2147483647, %v147
      %v155 = vand.u32 %v154, 8388607
      %v156 = vor.u32 %v155, 8388608
      %v157 = vsub.s32 0, %v156
      %v158 = vadd.s32 %v153, 1
      %vm159 = vcmp.gt.s32.totalorder %v158, 0
      %v160 = vsel %vm159, %v158, 0
      %v161 = vshrl.u32 %v160, 5
      %v162 = vand.u32 %v160, 31
      %v163 = vsub.s32 32, %v162
      %v164 = vshrl.u32 683565275, %v163
      %v165 = vshll.u32 683565275, %v162
      %v166 = vshrl.u32 2475754826, %v163
      %v167 = vor.u32 %v165, %v166
      %v168 = vshll.u32 2475754826, %v162
      %v169 = vshrl.u32 2131351028, %v163
      %v170 = vor.u32 %v168, %v169
      %v171 = vshll.u32 2131351028, %v162
      %v172 = vshrl.u32 2102212464, %v163
      %v173 = vor.u32 %v171, %v172
      %v174 = vshll.u32 2102212464, %v162
      %v175 = vshrl.u32 920167782, %v163
      %v176 = vor.u32 %v174, %v175
      %v177 = vshll.u32 920167782, %v162
      %v178 = vshrl.u32 1326507024, %v163
      %v179 = vor.u32 %v177, %v178
      %vm180 = vcmp.lt.s32.totalorder %v161, 1
      %vm181 = vcmp.lt.s32.totalorder %v161, 2
      %vm182 = vcmp.lt.s32.totalorder %v161, 3
      %vm183 = vcmp.lt.s32.totalorder %v161, 4
      %v184 = vsel %vm180, %v164, %v167
      %v185 = vsel %vm183, %v173, 2102212464
      %v186 = vsel %vm182, %v170, %v185
      %v187 = vsel %vm181, %v184, %v186
      %v188 = vsel %vm180, %v167, %v170
      %v189 = vsel %vm183, %v176, 920167782
      %v190 = vsel %vm182, %v173, %v189
      %v191 = vsel %vm181, %v188, %v190
      %v192 = vsel %vm180, %v170, %v173
      %v193 = vsel %vm183, %v179, 1326507024
      %v194 = vsel %vm182, %v176, %v193
      %v195 = vsel %vm181, %v192, %v194
      %v196 = vshll.u32 %v156, 8
      %v197 = vmul.u32.u64.compose %v196, %v195
      %v198 = vextract.low.u32 %v197
      %v199 = vextract.high.u32 %v197
      %v200 = vmul.u32.u64.compose %v196, %v191
      %v201 = vextract.low.u32 %v200
      %v202 = vextract.high.u32 %v200
      %v203 = vmul.u32 %v196, %v187
      %v204 = vadd.s32 %v199, %v201
      %vm205 = vc.u32 %v199, %v201
      %v206 = vadd.s32 %v202, 1
      %v207 = vsel %vm205, %v206, %v202
      %v208 = vadd.s32 %v203, %v207
      %v209 = vadd.s32 %v208, 536870912
      %v210 = vshrl.u32 %v209, 30
      %v211 = vshll.u32 %v210, 30
      %v212 = vsub.s32 %v208, %v211
      %vm213 = vcmp.lt.s32.totalorder %v212, 0
      %v214 = vsub.s32 0, %v212
      %v215 = vsel %vm213, %v214, %v212
      %v216 = vclz %v215
      %v217 = vsub.s32 %v216, 2
      %vm218 = vcmp.gt.s32.totalorder 0, %v217
      %v219 = vsel %vm218, 0, %v217
      %v220 = vsub.s32 32, %v219
      %v221 = vshll.u32 %v212, %v219
      %v222 = vshrl.u32 %v204, %v220
      %v223 = vor.u32 %v221, %v222
      %v224 = vsub.s32 4294967266, %v219
      %v225 = vadd.s32 %v224, 127
      %v226 = vshll.u32 %v225, 23
      %v227 = vor.u32 4788187, %v226
      %v228 = vand.u32 2147483647, %v227
      %v230 = vcvt.s32.f32 %v223
      %v231 = vmul.f32 %v230, %v228
      %v232 = vxor.u32 %v231, 2147483648
      %v233 = vsel %vm150, %v232, %v231
      %v234 = vsub.s32 4, %v210
      %v235 = vsel %vm150, %v234, %v210
      %v236 = vsel %vm149, %v147, %v233
      %v237 = vsel %vm149, 0, %v235
      %v238 = vcosq.f32.pop %v236
      %v239 = vsinq.f32.pop %v236
      %vm240 = vweird.f32 %v147
      %v241 = vadd.s32 %v237, 3
      %v242 = vand.u32 %v241, 3
      %vm243 = vcmp.lt.s32.totalorder %v242, 2
      %vm244 = vcmp.eq.s32.totalorder %v242, 0
      %v245 = vxor.u32 %v239, 2147483648
      %v246 = vsel %vm244, %v238, %v245
      %vm247 = vcmp.eq.s32.totalorder %v242, 2
      %v248 = vxor.u32 %v238, 2147483648
      %v249 = vsel %vm247, %v248, %v239
      %v250 = vsel %vm243, %v246, %v249
      %v251 = vsel %vm240, nan, %v250
      %252 = vst [vmem:[#allocation8] sm:$0xff] %v251
    $region29: #{tpu_custom_call.1} parent=1 // pred_fallthru
      _
    // Predicated region
    $region30: #{tpu_custom_call.1} parent=1 // pred_check
      _
    $region31: #{tpu_custom_call.1} parent=1 // pred_check_branch
      %254 = sbr.rel (0) target = $region33
    $region32: #{tpu_custom_call.1} parent=1 // pred_region
      %s256 = ssub.s32 128, 128
      %257 = vsyncadd [#allocation5], %s256
      %s259 = sshll.u32 [#allocation8], 4
      %s260 = int_to_ptr.vmem [resolvable:$true] %s259
      %262 = dma.vmem_to_hbm [thread:$0]  %s260, 128, %s3, [#allocation5]
    $region33: #{tpu_custom_call.1} parent=1 // pred_fallthru
      _
    // Predicated region
    $region34: #{tpu_custom_call.1} parent=1 // pred_check
      _
    $region35: #{tpu_custom_call.1} parent=1 // pred_check_branch
      %264 = sbr.rel (0) target = $region37
    $region36: #{tpu_custom_call.1} parent=1 // pred_region
      %265 = dma.done [#allocation5], 128
    $region37: #{tpu_custom_call.1} parent=1 // pred_fallthru
      _
    %266 = vsyncpa [#allocation4], 1
    %267 = vsyncpa [#allocation7], 1
    %268 = vsyncpa [#allocation5], 1

</llo_original>
